<compile_context>
chip_gen: v5e
topology: v5e:2x2
jax: 0.10.0
libtpu: 0.0.40
codegen_flags: <defaults>
</compile_context>

<pallas_src>
import functools
import numpy as np
import jax
import jax.numpy as jnp
from jax.experimental import pallas as pl
from jax.experimental.pallas import tpu as pltpu

EPS = 1e-5      # torch.nn.BatchNorm1d default
LANE = 128


def _round_up(x, m):
    return (x + m - 1) // m * m


# --------------------------------------------------------------------------
# Kernel
# --------------------------------------------------------------------------
def _melresnet_kernel(x_ref, w_in_ref, b0_ref,
                      w1s_ref, b1s_ref, w2s_ref, b2s_ref,
                      w_out_ref, b_out_ref, o_ref, *, res_blocks):
    """One (batch, time-tile) block per grid step.  Weights fully VMEM-resident."""
    x = x_ref[0]                                             # (T_TILE, K_tap)

    # conv_in (im2col'ed, BN scale folded into weights) + bias + relu
    h = jnp.dot(x, w_in_ref[...], preferred_element_type=jnp.float32)
    h = jnp.maximum(h + b0_ref[...], 0.0)

    # Residual blocks: 1x1 convs are channel matmuls (BN scales pre-folded).
    # TODO(synk): switch to lax.fori_loop with dynamic ref indexing if
    #             res_blocks grows large (>~10); small counts unroll fine.
    for r in range(res_blocks):
        residual = h
        y = jnp.dot(h, w1s_ref[r], preferred_element_type=jnp.float32)
        y = jnp.maximum(y + b1s_ref[r], 0.0)
        y = jnp.dot(y, w2s_ref[r], preferred_element_type=jnp.float32)
        h = (y + b2s_ref[r]) + residual

    # conv_out: 1x1 conv with bias.
    out = jnp.dot(h, w_out_ref[...], preferred_element_type=jnp.float32)
    o_ref[0] = (out + b_out_ref[...]).astype(o_ref.dtype)


# --------------------------------------------------------------------------
# Parameter preparation (BN folding, matmul layout, channel padding)
# --------------------------------------------------------------------------
def _fold_bn(bn):
    s = bn["gamma"] / jnp.sqrt(bn["var"] + EPS)
    return s, bn["beta"] - bn["mean"] * s


def _pad2(w, rows, cols):
    return jnp.pad(w, ((0, rows - w.shape[0]), (0, cols - w.shape[1])))


def prepare_params(p, *, ksize=5):
    """Torch-convention raw params -> folded, padded, matmul-layout params."""
    c_comp, c_in, _ = p["conv_in_w"].shape
    r_out = p["conv_out_w"].shape[0]
    c_tap = ksize * c_in
    c_tap_p = _round_up(c_tap, LANE)
    c_comp_p = _round_up(c_comp, LANE)
    r_out_p = _round_up(r_out, LANE)

    # conv_in: torch (C_comp, C_in, 5) -> (5*C_in, C_comp), BN0 scale folded.
    s0, b0 = _fold_bn(p["bn0"])
    w_in = jnp.transpose(p["conv_in_w"], (2, 1, 0)).reshape(c_tap, c_comp)
    w_in = _pad2(w_in * s0[None, :], c_tap_p, c_comp_p)
    b0 = jnp.pad(b0, (0, c_comp_p - c_comp)).reshape(1, c_comp_p)

    w1s, b1s, w2s, b2s = [], [], [], []
    for blk in p["blocks"]:
        s1, bb1 = _fold_bn(blk["bn1"])
        s2, bb2 = _fold_bn(blk["bn2"])
        w1 = blk["conv1_w"][:, :, 0].T * s1[None, :]
        w2 = blk["conv2_w"][:, :, 0].T * s2[None, :]
        w1s.append(_pad2(w1, c_comp_p, c_comp_p))
        w2s.append(_pad2(w2, c_comp_p, c_comp_p))
        b1s.append(jnp.pad(bb1, (0, c_comp_p - c_comp)).reshape(1, c_comp_p))
        b2s.append(jnp.pad(bb2, (0, c_comp_p - c_comp)).reshape(1, c_comp_p))

    w_out = _pad2(p["conv_out_w"][:, :, 0].T, c_comp_p, r_out_p)
    b_out = jnp.pad(p["conv_out_b"], (0, r_out_p - r_out)).reshape(1, r_out_p)

    return {
        "w_in": w_in, "b0": b0,
        "w1s": jnp.stack(w1s), "b1s": jnp.stack(b1s),
        "w2s": jnp.stack(w2s), "b2s": jnp.stack(b2s),
        "w_out": w_out, "b_out": b_out,
    }


# --------------------------------------------------------------------------
# Forward wrapper
# --------------------------------------------------------------------------
def melresnet_forward(x_ncw, params, *, res_blocks, ksize=5, t_tile=256):
    """x_ncw: (B, in_dims, T) like PyTorch.  Returns (B, res_out_dims, T-4)."""
    b, c_in, t = x_ncw.shape
    t_out = t - (ksize - 1)
    r_out = params["conv_out_w"].shape[0]

    prep = prepare_params(params, ksize=ksize)
    c_tap = ksize * c_in
    c_tap_p = prep["w_in"].shape[0]
    r_out_p = prep["w_out"].shape[1]

    # im2col in the wrapper: (B, T, C_in) -> (B, t_out, 5*C_in), column order
    # k*C_in + c matches the reshaped conv_in weight.
    x_nwc = jnp.transpose(x_ncw, (0, 2, 1)).astype(jnp.float32)
    taps = jnp.concatenate([x_nwc[:, k:k + t_out, :] for k in range(ksize)],
                           axis=2)

    # Time tiling (multiple of 8 sublanes; 256 aligns the MXU M dim on v6e).
    tile = t_tile if t_out >= t_tile else _round_up(t_out, 8)
    t_pad = _round_up(t_out, tile)
    taps = jnp.pad(taps, ((0, 0), (0, t_pad - t_out), (0, c_tap_p - c_tap)))

    kernel = functools.partial(_melresnet_kernel, res_blocks=res_blocks)

    out = pl.pallas_call(
        kernel,
        out_shape=jax.ShapeDtypeStruct((b, t_pad, r_out_p), jnp.float32),
        grid=(b, t_pad // tile),
        in_specs=[
            pl.BlockSpec((1, tile, c_tap_p), lambda i, j: (i, j, 0)),   # x taps
            pl.BlockSpec(prep["w_in"].shape, lambda i, j: (0, 0)),
            pl.BlockSpec(prep["b0"].shape, lambda i, j: (0, 0)),
            pl.BlockSpec(prep["w1s"].shape, lambda i, j: (0, 0, 0)),
            pl.BlockSpec(prep["b1s"].shape, lambda i, j: (0, 0, 0)),
            pl.BlockSpec(prep["w2s"].shape, lambda i, j: (0, 0, 0)),
            pl.BlockSpec(prep["b2s"].shape, lambda i, j: (0, 0, 0)),
            pl.BlockSpec(prep["w_out"].shape, lambda i, j: (0, 0)),
            pl.BlockSpec(prep["b_out"].shape, lambda i, j: (0, 0)),
        ],
        out_specs=pl.BlockSpec((1, tile, r_out_p), lambda i, j: (i, j, 0)),
        compiler_params=pltpu.CompilerParams(
            dimension_semantics=("parallel", "parallel")),
    )(taps, prep["w_in"], prep["b0"], prep["w1s"], prep["b1s"],
      prep["w2s"], prep["b2s"], prep["w_out"], prep["b_out"])

    # Drop time/channel padding, back to NCW.
    return jnp.transpose(out[:, :t_out, :r_out], (0, 2, 1))


# --------------------------------------------------------------------------
# Synthetic parameters (torch layout) + pure-JAX reference
# --------------------------------------------------------------------------
def init_params(key, res_blocks, in_dims, compute_dims, res_out_dims, ksize=5):
    ks = iter(jax.random.split(key, 7 + 10 * res_blocks))

    def bn(c):
        return {
            "gamma": 0.5 + jax.random.uniform(next(ks), (c,), jnp.float32),
            "beta": 0.1 * jax.random.normal(next(ks), (c,), jnp.float32),
            "mean": 0.1 * jax.random.normal(next(ks), (c,), jnp.float32),
            "var": 0.5 + jnp.abs(jax.random.normal(next(ks), (c,), jnp.float32)),
        }

    p = {
        "conv_in_w": 0.1 * jax.random.normal(
            next(ks), (compute_dims, in_dims, ksize), jnp.float32),
        "bn0": bn(compute_dims),
        "blocks": [],
    }
    for _ in range(res_blocks):
        p["blocks"].append({
            "conv1_w": 0.1 * jax.random.normal(
                next(ks), (compute_dims, compute_dims, 1), jnp.float32),
            "bn1": bn(compute_dims),
            "conv2_w": 0.1 * jax.random.normal(
                next(ks), (compute_dims, compute_dims, 1), jnp.float32),
            "bn2": bn(compute_dims),
        })
    p["conv_out_w"] = 0.1 * jax.random.normal(
        next(ks), (res_out_dims, compute_dims, 1), jnp.float32)
    p["conv_out_b"] = 0.1 * jax.random.normal(
        next(ks), (res_out_dims,), jnp.float32)
    return p


def ref_forward(x_ncw, p, *, ksize=5):
    """Pure-JAX eval-mode reference mirroring the PyTorch module math."""
    def bn(x, st):  # x: (B, T, C)
        s = st["gamma"] / jnp.sqrt(st["var"] + EPS)
        return (x - st["mean"]) * s + st["beta"]

    x = jnp.transpose(x_ncw, (0, 2, 1)).astype(jnp.float32)      # (B, T, C_in)
    t_out = x.shape[1] - (ksize - 1)
    w_in = jnp.transpose(p["conv_in_w"], (2, 1, 0))              # (5, C_in, C)
    h = sum(jnp.einsum("btc,cd->btd", x[:, k:k + t_out, :], w_in[k])
            for k in range(ksize))
    h = jax.nn.relu(bn(h, p["bn0"]))
    for blk in p["blocks"]:
        res = h
        y = jnp.einsum("btc,cd->btd", h, blk["conv1_w"][:, :, 0].T)
        y = jax.nn.relu(bn(y, blk["bn1"]))
        y = jnp.einsum("btc,cd->btd", y, blk["conv2_w"][:, :, 0].T)
        h = bn(y, blk["bn2"]) + res
    out = jnp.einsum("btc,cd->btd", h, p["conv_out_w"][:, :, 0].T) + p["conv_out_b"]
    return jnp.transpose(out, (0, 2, 1))


if __name__ == "__main__":
    # Small MelResNet: res_blocks=2, in_dims=8, compute_dims=32, res_out_dims=16
    RES_BLOCKS, IN_DIMS, COMPUTE_DIMS, RES_OUT_DIMS = 2, 8, 32, 16
    B, T = 2, 16

    key = jax.random.PRNGKey(0)
    k_x, k_p = jax.random.split(key)
    x = jax.random.normal(k_x, (B, IN_DIMS, T), jnp.float32)     # NCW, like PyTorch
    params = init_params(k_p, RES_BLOCKS, IN_DIMS, COMPUTE_DIMS, RES_OUT_DIMS)

    out = jax.block_until_ready(melresnet_forward(x, params, res_blocks=RES_BLOCKS))
    expected = jax.block_until_ready(ref_forward(x, params))

    assert out.shape == (B, RES_OUT_DIMS, T - 4), out.shape
    # Tolerance sized for single-pass bf16 MXU (default precision) vs reference.
    if not np.allclose(np.asarray(out), np.asarray(expected), rtol=3e-2, atol=3e-2):
        err = float(np.max(np.abs(np.asarray(out) - np.asarray(expected))))
        raise AssertionError(f"Pallas MelResNet mismatch vs JAX reference "
                             f"(max abs err {err})")

    print("KERNEL_OK")
</pallas_src>

<mosaic_0001>
module attributes {stable_mosaic.version = 11 : i64} {
  func.func @_melresnet_kernel(%arg0: i32, %arg1: i32, %arg2: memref<1x16x128xf32, #tpu.memory_space<vmem>>, %arg3: memref<128x128xf32, #tpu.memory_space<vmem>>, %arg4: memref<1x128xf32, #tpu.memory_space<vmem>>, %arg5: memref<2x128x128xf32, #tpu.memory_space<vmem>>, %arg6: memref<2x1x128xf32, #tpu.memory_space<vmem>>, %arg7: memref<2x128x128xf32, #tpu.memory_space<vmem>>, %arg8: memref<2x1x128xf32, #tpu.memory_space<vmem>>, %arg9: memref<128x128xf32, #tpu.memory_space<vmem>>, %arg10: memref<1x128xf32, #tpu.memory_space<vmem>>, %arg11: memref<1x16x128xf32, #tpu.memory_space<vmem>>) attributes {dimension_semantics = [#tpu.dimension_semantics<parallel>, #tpu.dimension_semantics<parallel>], iteration_bounds = array<i64: 2, 1>, scalar_prefetch = 0 : i64, scratch_operands = 0 : i64, tpu.core_type = #tpu.core_type<tc>, window_params = [{transform_indices = @transform_0, window_bounds = array<i64: 1, 16, 128>}, {pipeline_mode = #tpu.pipeline_mode<synchronous>, transform_indices = @transform_1, window_bounds = array<i64: 128, 128>}, {pipeline_mode = #tpu.pipeline_mode<synchronous>, transform_indices = @transform_2, window_bounds = array<i64: 1, 128>}, {pipeline_mode = #tpu.pipeline_mode<synchronous>, transform_indices = @transform_3, window_bounds = array<i64: 2, 128, 128>}, {pipeline_mode = #tpu.pipeline_mode<synchronous>, transform_indices = @transform_4, window_bounds = array<i64: 2, 1, 128>}, {pipeline_mode = #tpu.pipeline_mode<synchronous>, transform_indices = @transform_5, window_bounds = array<i64: 2, 128, 128>}, {pipeline_mode = #tpu.pipeline_mode<synchronous>, transform_indices = @transform_6, window_bounds = array<i64: 2, 1, 128>}, {pipeline_mode = #tpu.pipeline_mode<synchronous>, transform_indices = @transform_7, window_bounds = array<i64: 128, 128>}, {pipeline_mode = #tpu.pipeline_mode<synchronous>, transform_indices = @transform_8, window_bounds = array<i64: 1, 128>}, {transform_indices = @transform_9, window_bounds = array<i64: 1, 16, 128>}]} {
    %c0 = arith.constant 0 : index
    %c0_0 = arith.constant 0 : index
    %c0_1 = arith.constant 0 : index
    %0 = vector.load %arg2[%c0, %c0_0, %c0_1] : memref<1x16x128xf32, #tpu.memory_space<vmem>>, vector<1x16x128xf32>
    %1 = vector.shape_cast %0 : vector<1x16x128xf32> to vector<16x128xf32>
    %c0_2 = arith.constant 0 : index
    %c0_3 = arith.constant 0 : index
    %2 = vector.load %arg3[%c0_2, %c0_3] : memref<128x128xf32, #tpu.memory_space<vmem>>, vector<128x128xf32>
    %cst = arith.constant dense<0.000000e+00> : vector<16x128xf32>
    %3 = tpu.matmul %1, %2, %cst {dimension_numbers = #tpu.dot_dimension_numbers<[1], [0], [0], [1], [0, 0, 1, 1], [], []>} : vector<16x128xf32>, vector<128x128xf32>, vector<16x128xf32> -> vector<16x128xf32>
    %c0_4 = arith.constant 0 : index
    %c0_5 = arith.constant 0 : index
    %4 = vector.load %arg4[%c0_4, %c0_5] : memref<1x128xf32, #tpu.memory_space<vmem>>, vector<1x128xf32>
    %5 = vector.broadcast %4 : vector<1x128xf32> to vector<16x128xf32>
    %6 = arith.addf %3, %5 : vector<16x128xf32>
    %cst_6 = arith.constant 0.000000e+00 : f32
    %7 = vector.broadcast %cst_6 : f32 to vector<16x128xf32>
    %8 = arith.maximumf %6, %7 : vector<16x128xf32>
    %c0_7 = arith.constant 0 : index
    %c0_8 = arith.constant 0 : index
    %c0_9 = arith.constant 0 : index
    %9 = vector.load %arg5[%c0_7, %c0_8, %c0_9] : memref<2x128x128xf32, #tpu.memory_space<vmem>>, vector<1x128x128xf32>
    %10 = vector.shape_cast %9 : vector<1x128x128xf32> to vector<128x128xf32>
    %cst_10 = arith.constant dense<0.000000e+00> : vector<16x128xf32>
    %11 = tpu.matmul %8, %10, %cst_10 {dimension_numbers = #tpu.dot_dimension_numbers<[1], [0], [0], [1], [0, 0, 1, 1], [], []>} : vector<16x128xf32>, vector<128x128xf32>, vector<16x128xf32> -> vector<16x128xf32>
    %c0_11 = arith.constant 0 : index
    %c0_12 = arith.constant 0 : index
    %c0_13 = arith.constant 0 : index
    %12 = vector.load %arg6[%c0_11, %c0_12, %c0_13] : memref<2x1x128xf32, #tpu.memory_space<vmem>>, vector<1x1x128xf32>
    %13 = vector.shape_cast %12 : vector<1x1x128xf32> to vector<1x128xf32>
    %14 = vector.broadcast %13 : vector<1x128xf32> to vector<16x128xf32>
    %15 = arith.addf %11, %14 : vector<16x128xf32>
    %cst_14 = arith.constant 0.000000e+00 : f32
    %16 = vector.broadcast %cst_14 : f32 to vector<16x128xf32>
    %17 = arith.maximumf %15, %16 : vector<16x128xf32>
    %c0_15 = arith.constant 0 : index
    %c0_16 = arith.constant 0 : index
    %c0_17 = arith.constant 0 : index
    %18 = vector.load %arg7[%c0_15, %c0_16, %c0_17] : memref<2x128x128xf32, #tpu.memory_space<vmem>>, vector<1x128x128xf32>
    %19 = vector.shape_cast %18 : vector<1x128x128xf32> to vector<128x128xf32>
    %cst_18 = arith.constant dense<0.000000e+00> : vector<16x128xf32>
    %20 = tpu.matmul %17, %19, %cst_18 {dimension_numbers = #tpu.dot_dimension_numbers<[1], [0], [0], [1], [0, 0, 1, 1], [], []>} : vector<16x128xf32>, vector<128x128xf32>, vector<16x128xf32> -> vector<16x128xf32>
    %c0_19 = arith.constant 0 : index
    %c0_20 = arith.constant 0 : index
    %c0_21 = arith.constant 0 : index
    %21 = vector.load %arg8[%c0_19, %c0_20, %c0_21] : memref<2x1x128xf32, #tpu.memory_space<vmem>>, vector<1x1x128xf32>
    %22 = vector.shape_cast %21 : vector<1x1x128xf32> to vector<1x128xf32>
    %23 = vector.broadcast %22 : vector<1x128xf32> to vector<16x128xf32>
    %24 = arith.addf %20, %23 : vector<16x128xf32>
    %25 = arith.addf %24, %8 : vector<16x128xf32>
    %c1 = arith.constant 1 : index
    %c0_22 = arith.constant 0 : index
    %c0_23 = arith.constant 0 : index
    %26 = vector.load %arg5[%c1, %c0_22, %c0_23] : memref<2x128x128xf32, #tpu.memory_space<vmem>>, vector<1x128x128xf32>
    %27 = vector.shape_cast %26 : vector<1x128x128xf32> to vector<128x128xf32>
    %cst_24 = arith.constant dense<0.000000e+00> : vector<16x128xf32>
    %28 = tpu.matmul %25, %27, %cst_24 {dimension_numbers = #tpu.dot_dimension_numbers<[1], [0], [0], [1], [0, 0, 1, 1], [], []>} : vector<16x128xf32>, vector<128x128xf32>, vector<16x128xf32> -> vector<16x128xf32>
    %c1_25 = arith.constant 1 : index
    %c0_26 = arith.constant 0 : index
    %c0_27 = arith.constant 0 : index
    %29 = vector.load %arg6[%c1_25, %c0_26, %c0_27] : memref<2x1x128xf32, #tpu.memory_space<vmem>>, vector<1x1x128xf32>
    %30 = vector.shape_cast %29 : vector<1x1x128xf32> to vector<1x128xf32>
    %31 = vector.broadcast %30 : vector<1x128xf32> to vector<16x128xf32>
    %32 = arith.addf %28, %31 : vector<16x128xf32>
    %cst_28 = arith.constant 0.000000e+00 : f32
    %33 = vector.broadcast %cst_28 : f32 to vector<16x128xf32>
    %34 = arith.maximumf %32, %33 : vector<16x128xf32>
    %c1_29 = arith.constant 1 : index
    %c0_30 = arith.constant 0 : index
    %c0_31 = arith.constant 0 : index
    %35 = vector.load %arg7[%c1_29, %c0_30, %c0_31] : memref<2x128x128xf32, #tpu.memory_space<vmem>>, vector<1x128x128xf32>
    %36 = vector.shape_cast %35 : vector<1x128x128xf32> to vector<128x128xf32>
    %cst_32 = arith.constant dense<0.000000e+00> : vector<16x128xf32>
    %37 = tpu.matmul %34, %36, %cst_32 {dimension_numbers = #tpu.dot_dimension_numbers<[1], [0], [0], [1], [0, 0, 1, 1], [], []>} : vector<16x128xf32>, vector<128x128xf32>, vector<16x128xf32> -> vector<16x128xf32>
    %c1_33 = arith.constant 1 : index
    %c0_34 = arith.constant 0 : index
    %c0_35 = arith.constant 0 : index
    %38 = vector.load %arg8[%c1_33, %c0_34, %c0_35] : memref<2x1x128xf32, #tpu.memory_space<vmem>>, vector<1x1x128xf32>
    %39 = vector.shape_cast %38 : vector<1x1x128xf32> to vector<1x128xf32>
    %40 = vector.broadcast %39 : vector<1x128xf32> to vector<16x128xf32>
    %41 = arith.addf %37, %40 : vector<16x128xf32>
    %42 = arith.addf %41, %25 : vector<16x128xf32>
    %c0_36 = arith.constant 0 : index
    %c0_37 = arith.constant 0 : index
    %43 = vector.load %arg9[%c0_36, %c0_37] : memref<128x128xf32, #tpu.memory_space<vmem>>, vector<128x128xf32>
    %cst_38 = arith.constant dense<0.000000e+00> : vector<16x128xf32>
    %44 = tpu.matmul %42, %43, %cst_38 {dimension_numbers = #tpu.dot_dimension_numbers<[1], [0], [0], [1], [0, 0, 1, 1], [], []>} : vector<16x128xf32>, vector<128x128xf32>, vector<16x128xf32> -> vector<16x128xf32>
    %c0_39 = arith.constant 0 : index
    %c0_40 = arith.constant 0 : index
    %45 = vector.load %arg10[%c0_39, %c0_40] : memref<1x128xf32, #tpu.memory_space<vmem>>, vector<1x128xf32>
    %46 = vector.broadcast %45 : vector<1x128xf32> to vector<16x128xf32>
    %47 = arith.addf %44, %46 : vector<16x128xf32>
    %c0_41 = arith.constant 0 : index
    %c0_42 = arith.constant 0 : index
    %c0_43 = arith.constant 0 : index
    %48 = vector.load %arg11[%c0_41, %c0_42, %c0_43] : memref<1x16x128xf32, #tpu.memory_space<vmem>>, vector<1x16x128xf32>
    %49 = vector.shape_cast %48 : vector<1x16x128xf32> to vector<16x128xf32>
    %50 = vector.shape_cast %47 : vector<16x128xf32> to vector<1x16x128xf32>
    tpu.vector_store %arg11[%c0_41, %c0_42, %c0_43], %50 {strides = array<i32>} : memref<1x16x128xf32, #tpu.memory_space<vmem>>, vector<1x16x128xf32>,
    return
  }
  func.func @transform_0(%arg0: i32, %arg1: i32) -> (i32, i32, i32) {
    %c0_i32 = arith.constant 0 : i32
    %c0_i32_0 = arith.constant 0 : i32
    return %arg0, %arg1, %c0_i32 : i32, i32, i32
  }
  func.func @transform_1(%arg0: i32, %arg1: i32) -> (i32, i32) {
    %c0_i32 = arith.constant 0 : i32
    %c0_i32_0 = arith.constant 0 : i32
    %c0_i32_1 = arith.constant 0 : i32
    return %c0_i32, %c0_i32_0 : i32, i32
  }
  func.func @transform_2(%arg0: i32, %arg1: i32) -> (i32, i32) {
    %c0_i32 = arith.constant 0 : i32
    %c0_i32_0 = arith.constant 0 : i32
    %c0_i32_1 = arith.constant 0 : i32
    return %c0_i32, %c0_i32_0 : i32, i32
  }
  func.func @transform_3(%arg0: i32, %arg1: i32) -> (i32, i32, i32) {
    %c0_i32 = arith.constant 0 : i32
    %c0_i32_0 = arith.constant 0 : i32
    %c0_i32_1 = arith.constant 0 : i32
    %c0_i32_2 = arith.constant 0 : i32
    return %c0_i32, %c0_i32_0, %c0_i32_1 : i32, i32, i32
  }
  func.func @transform_4(%arg0: i32, %arg1: i32) -> (i32, i32, i32) {
    %c0_i32 = arith.constant 0 : i32
    %c0_i32_0 = arith.constant 0 : i32
    %c0_i32_1 = arith.constant 0 : i32
    %c0_i32_2 = arith.constant 0 : i32
    return %c0_i32, %c0_i32_0, %c0_i32_1 : i32, i32, i32
  }
  func.func @transform_5(%arg0: i32, %arg1: i32) -> (i32, i32, i32) {
    %c0_i32 = arith.constant 0 : i32
    %c0_i32_0 = arith.constant 0 : i32
    %c0_i32_1 = arith.constant 0 : i32
    %c0_i32_2 = arith.constant 0 : i32
    return %c0_i32, %c0_i32_0, %c0_i32_1 : i32, i32, i32
  }
  func.func @transform_6(%arg0: i32, %arg1: i32) -> (i32, i32, i32) {
    %c0_i32 = arith.constant 0 : i32
    %c0_i32_0 = arith.constant 0 : i32
    %c0_i32_1 = arith.constant 0 : i32
    %c0_i32_2 = arith.constant 0 : i32
    return %c0_i32, %c0_i32_0, %c0_i32_1 : i32, i32, i32
  }
  func.func @transform_7(%arg0: i32, %arg1: i32) -> (i32, i32) {
    %c0_i32 = arith.constant 0 : i32
    %c0_i32_0 = arith.constant 0 : i32
    %c0_i32_1 = arith.constant 0 : i32
    return %c0_i32, %c0_i32_0 : i32, i32
  }
  func.func @transform_8(%arg0: i32, %arg1: i32) -> (i32, i32) {
    %c0_i32 = arith.constant 0 : i32
    %c0_i32_0 = arith.constant 0 : i32
    %c0_i32_1 = arith.constant 0 : i32
    return %c0_i32, %c0_i32_0 : i32, i32
  }
  func.func @transform_9(%arg0: i32, %arg1: i32) -> (i32, i32, i32) {
    %c0_i32 = arith.constant 0 : i32
    %c0_i32_0 = arith.constant 0 : i32
    return %arg0, %arg1, %c0_i32 : i32, i32, i32
  }
}

</mosaic_0001>

<llo_original>
// kernel: tpu_custom_call.1
$region0: #{tpu_custom_call.1}
  #allocation0 [shape = 'u32[]', space=smem, size = 0x4, offset = 0x4, fixed_abs, tag = 'smem constant byte address 0x4 - core index']
  #allocation1 [shape = 'u32[72,128]{1,0:T(1,128)}', space=vmem, size = 0x9000, scoped, tag = 'internal scratch']
  %s0 = inlined_call_operand.hbm [shape: f32[2,16,128], index: 0, kind: input, shape index: {}]
  %s1 = inlined_call_operand.hbm [shape: f32[128,128], index: 1, kind: input, shape index: {}]
  %s2 = inlined_call_operand.hbm [shape: f32[1,128], index: 2, kind: input, shape index: {}]
  %s3 = inlined_call_operand.hbm [shape: f32[2,128,128], index: 3, kind: input, shape index: {}]
  %s4 = inlined_call_operand.vmem [shape: f32[2,1,128], index: 4, kind: input, shape index: {}]
  %s5 = inlined_call_operand.hbm [shape: f32[2,128,128], index: 5, kind: input, shape index: {}]
  %s6 = inlined_call_operand.vmem [shape: f32[2,1,128], index: 6, kind: input, shape index: {}]
  %s7 = inlined_call_operand.hbm [shape: f32[128,128], index: 7, kind: input, shape index: {}]
  %s8 = inlined_call_operand.vmem [shape: f32[1,128], index: 8, kind: input, shape index: {}]
  %s9 = inlined_call_operand.hbm [shape: f32[2,16,128], index: 9, kind: output, shape index: {}]
  %s10 = sld [smem:[#allocation0]]
  $region93: #{tpu_custom_call.1} parent=0
    _
  %s12 = ssub.s32 1, %s10
  %s13 = scalar_select 0, %s12, %s10
  $region1: #{tpu_custom_call.1} parent=0
    #allocation2 [shape = 'u8[16384]{0}', space=vmem, size = 0x4000, scoped, tag = 'input window, operand 0']
    #allocation3 [shape = 's32[2]{0}', space=sflag, size = 0x8, scoped, tag = 'scoped memory for tpu_custom_call.1']
    #allocation4 [shape = 's32[2]{0}', space=sflag, size = 0x8, scoped, tag = 'scoped memory for tpu_custom_call.1']
    #allocation5 [shape = 'u8[65536]{0}', space=vmem, size = 0x10000, scoped, tag = 'input window, operand 1, single buffered']
    #allocation6 [shape = 's32[1]{0}', space=sflag, size = 0x4, scoped, tag = 'scoped memory for tpu_custom_call.1']
    #allocation7 [shape = 'u8[512]{0}', space=vmem, size = 0x400, scoped, tag = 'input window, operand 2, single buffered']
    #allocation8 [shape = 'u8[131072]{0}', space=vmem, size = 0x20000, scoped, tag = 'input window, operand 3, single buffered']
    #allocation9 [shape = 's32[1]{0}', space=sflag, size = 0x4, scoped, tag = 'scoped memory for tpu_custom_call.1']
    #allocation10 [shape = 'u8[131072]{0}', space=vmem, size = 0x20000, scoped, tag = 'input window, operand 5, single buffered']
    #allocation11 [shape = 'u8[65536]{0}', space=vmem, size = 0x10000, scoped, tag = 'input window, operand 7, single buffered']
    #allocation12 [shape = 's32[1]{0}', space=sflag, size = 0x4, scoped, tag = 'scoped memory for tpu_custom_call.1']
    #allocation13 [shape = 'u8[16384]{0}', space=vmem, size = 0x4000, scoped, tag = 'output window, operand 0']
    %14 = vsyncpa [#allocation3], 0
    %s15 = scalar_lea.sflag [#allocation3], 1
    %16 = vsyncpa %s15, 0
    %17 = vsyncpa [#allocation6], 0
    %18 = vsyncpa [#allocation9], 0
    %19 = vsyncpa [#allocation12], 0
    %20 = vsyncpa [#allocation4], 0
    %s21 = scalar_lea.sflag [#allocation4], 1
    %22 = vsyncpa %s21, 0
    loop: start=0, step=1, limit=4
    $region2: #{tpu_custom_call.1} parent=1 // loop_pre_header
      _
    $region3: #{tpu_custom_call.1} parent=1 // loop_header
      %s24 = sphi 0, %s28
      %p25 = scmp.ge.s32.totalorder %s24, 4
      %s31 = sphi 0, %s43
      %s32 = sphi 0, %s39
      %s33 = sphi 0, %s31
      %s34 = sphi 0, %s32
      %s35 = sphi 0, %s33
      %s36 = sphi 0, %s34
      %s48 = sphi 0, %s50
      %s51 = sphi 0, %s48
      %s52 = sphi 0, %s51
      %s68 = sphi 0, %s52
      %s72 = sphi 0, %s72
      %s74 = sphi 0, %s72
      %s75 = sphi 0, %s74
      %s89 = sphi 0, %s75
      %s93 = sphi 0, %s93
      %s95 = sphi 0, %s93
      %s96 = sphi 0, %s95
      %s110 = sphi 0, %s96
      %s114 = sphi 0, %s114
      %s116 = sphi 0, %s114
      %s117 = sphi 0, %s116
      %s131 = sphi 0, %s117
      %s135 = sphi 0, %s135
      %s137 = sphi 0, %s135
      %s138 = sphi 0, %s137
      %s152 = sphi 0, %s138
      %s156 = sphi 0, %s156
      %s158 = sphi 0, %s156
      %s159 = sphi 0, %s158
      %s173 = sphi 0, %s159
      %s177 = sphi 0, %s177
      %s179 = sphi 0, %s177
      %s180 = sphi 0, %s179
      %s194 = sphi 0, %s180
      %s198 = sphi 0, %s198
      %s200 = sphi 0, %s198
      %s201 = sphi 0, %s200
      %s215 = sphi 0, %s201
      %s219 = sphi 0, %s219
      %s221 = sphi 0, %s219
      %s222 = sphi 0, %s221
      %s236 = sphi 0, %s222
      %s244 = sphi 0, %s246
      %s247 = sphi 0, %s244
      %s248 = sphi 0, %s247
      %s264 = sphi 0, %s248
    $region4: #{tpu_custom_call.1} parent=1 // loop_header_branch
      %27 = sbr.rel (%p25) target = $region8
    $region5: #{tpu_custom_call.1} parent=1 // loop_body
      %s29 = ssub.s32 %s24, 1
      %s30 = ssub.s32 %s24, 2
      %s37 = sadd.s32 1, %s32
      %p38 = scmp.ge.s32.totalorder %s37, 1
      %s39 = scalar_select %p38, 0, %s37
      %s40 = sadd.s32 1, %s31
      %s41 = scalar_select %p38, %s40, %s31
      %p42 = scmp.ge.s32.totalorder %s41, 2
      %s43 = scalar_select %p42, 0, %s41
      %s44 = ssub.s32 %s31, %s43
      %s45 = ssub.s32 %s32, %s39
      %s46 = sor.u32 %s44, %s45
      %p47 = scmp.eq.s32.totalorder %s46, 0
      %s49 = sadd.s32 %s48, 1
      %s50 = scalar_select %p47, %s48, %s49
      %p53 = pneg %p47
      %p54 = scmp.eq.s32.totalorder %s24, 1
      %p55 = por %p53, %p54
      %p56 = scmp.ne.s32.totalorder %s48, %s51
      %p57 = scmp.eq.s32.totalorder %s24, 0
      %p58 = por %p56, %p57
      %p59 = scmp.ne.s32.totalorder %s48, %s51
      %p60 = scmp.eq.s32.totalorder %s29, 1
      %p61 = por %p59, %p60
      %p62 = scmp.ne.s32.totalorder %s51, %s52
      %p63 = scmp.eq.s32.totalorder %s29, 0
      %p64 = por %p62, %p63
      %p65 = scmp.ne.s32.totalorder %s51, %s52
      %p66 = scmp.eq.s32.totalorder %s30, 1
      %p67 = por %p65, %p66
      %p69 = scmp.ne.s32.totalorder %s52, %s68
      %p70 = scmp.eq.s32.totalorder %s30, 0
      %p71 = por %p69, %p70
      %s73 = sadd.s32 %s72, 1
      %p76 = scmp.eq.s32.totalorder %s24, 1
      %p77 = scmp.ne.s32.totalorder %s72, %s74
      %p78 = scmp.eq.s32.totalorder %s24, 0
      %p79 = por %p77, %p78
      %p80 = scmp.ne.s32.totalorder %s72, %s74
      %p81 = scmp.eq.s32.totalorder %s29, 1
      %p82 = por %p80, %p81
      %p83 = scmp.ne.s32.totalorder %s74, %s75
      %p84 = scmp.eq.s32.totalorder %s29, 0
      %p85 = por %p83, %p84
      %p86 = scmp.ne.s32.totalorder %s74, %s75
      %p87 = scmp.eq.s32.totalorder %s30, 1
      %p88 = por %p86, %p87
      %p90 = scmp.ne.s32.totalorder %s75, %s89
      %p91 = scmp.eq.s32.totalorder %s30, 0
      %p92 = por %p90, %p91
      %s94 = sadd.s32 %s93, 1
      %p97 = scmp.eq.s32.totalorder %s24, 1
      %p98 = scmp.ne.s32.totalorder %s93, %s95
      %p99 = scmp.eq.s32.totalorder %s24, 0
      %p100 = por %p98, %p99
      %p101 = scmp.ne.s32.totalorder %s93, %s95
      %p102 = scmp.eq.s32.totalorder %s29, 1
      %p103 = por %p101, %p102
      %p104 = scmp.ne.s32.totalorder %s95, %s96
      %p105 = scmp.eq.s32.totalorder %s29, 0
      %p106 = por %p104, %p105
      %p107 = scmp.ne.s32.totalorder %s95, %s96
      %p108 = scmp.eq.s32.totalorder %s30, 1
      %p109 = por %p107, %p108
      %p111 = scmp.ne.s32.totalorder %s96, %s110
      %p112 = scmp.eq.s32.totalorder %s30, 0
      %p113 = por %p111, %p112
      %s115 = sadd.s32 %s114, 1
      %p118 = scmp.eq.s32.totalorder %s24, 1
      %p119 = scmp.ne.s32.totalorder %s114, %s116
      %p120 = scmp.eq.s32.totalorder %s24, 0
      %p121 = por %p119, %p120
      %p122 = scmp.ne.s32.totalorder %s114, %s116
      %p123 = scmp.eq.s32.totalorder %s29, 1
      %p124 = por %p122, %p123
      %p125 = scmp.ne.s32.totalorder %s116, %s117
      %p126 = scmp.eq.s32.totalorder %s29, 0
      %p127 = por %p125, %p126
      %p128 = scmp.ne.s32.totalorder %s116, %s117
      %p129 = scmp.eq.s32.totalorder %s30, 1
      %p130 = por %p128, %p129
      %p132 = scmp.ne.s32.totalorder %s117, %s131
      %p133 = scmp.eq.s32.totalorder %s30, 0
      %p134 = por %p132, %p133
      %s136 = sadd.s32 %s135, 1
      %p139 = scmp.eq.s32.totalorder %s24, 1
      %p140 = scmp.ne.s32.totalorder %s135, %s137
      %p141 = scmp.eq.s32.totalorder %s24, 0
      %p142 = por %p140, %p141
      %p143 = scmp.ne.s32.totalorder %s135, %s137
      %p144 = scmp.eq.s32.totalorder %s29, 1
      %p145 = por %p143, %p144
      %p146 = scmp.ne.s32.totalorder %s137, %s138
      %p147 = scmp.eq.s32.totalorder %s29, 0
      %p148 = por %p146, %p147
      %p149 = scmp.ne.s32.totalorder %s137, %s138
      %p150 = scmp.eq.s32.totalorder %s30, 1
      %p151 = por %p149, %p150
      %p153 = scmp.ne.s32.totalorder %s138, %s152
      %p154 = scmp.eq.s32.totalorder %s30, 0
      %p155 = por %p153, %p154
      %s157 = sadd.s32 %s156, 1
      %p160 = scmp.eq.s32.totalorder %s24, 1
      %p161 = scmp.ne.s32.totalorder %s156, %s158
      %p162 = scmp.eq.s32.totalorder %s24, 0
      %p163 = por %p161, %p162
      %p164 = scmp.ne.s32.totalorder %s156, %s158
      %p165 = scmp.eq.s32.totalorder %s29, 1
      %p166 = por %p164, %p165
      %p167 = scmp.ne.s32.totalorder %s158, %s159
      %p168 = scmp.eq.s32.totalorder %s29, 0
      %p169 = por %p167, %p168
      %p170 = scmp.ne.s32.totalorder %s158, %s159
      %p171 = scmp.eq.s32.totalorder %s30, 1
      %p172 = por %p170, %p171
      %p174 = scmp.ne.s32.totalorder %s159, %s173
      %p175 = scmp.eq.s32.totalorder %s30, 0
      %p176 = por %p174, %p175
      %s178 = sadd.s32 %s177, 1
      %p181 = scmp.eq.s32.totalorder %s24, 1
      %p182 = scmp.ne.s32.totalorder %s177, %s179
      %p183 = scmp.eq.s32.totalorder %s24, 0
      %p184 = por %p182, %p183
      %p185 = scmp.ne.s32.totalorder %s177, %s179
      %p186 = scmp.eq.s32.totalorder %s29, 1
      %p187 = por %p185, %p186
      %p188 = scmp.ne.s32.totalorder %s179, %s180
      %p189 = scmp.eq.s32.totalorder %s29, 0
      %p190 = por %p188, %p189
      %p191 = scmp.ne.s32.totalorder %s179, %s180
      %p192 = scmp.eq.s32.totalorder %s30, 1
      %p193 = por %p191, %p192
      %p195 = scmp.ne.s32.totalorder %s180, %s194
      %p196 = scmp.eq.s32.totalorder %s30, 0
      %p197 = por %p195, %p196
      %s199 = sadd.s32 %s198, 1
      %p202 = scmp.eq.s32.totalorder %s24, 1
      %p203 = scmp.ne.s32.totalorder %s198, %s200
      %p204 = scmp.eq.s32.totalorder %s24, 0
      %p205 = por %p203, %p204
      %p206 = scmp.ne.s32.totalorder %s198, %s200
      %p207 = scmp.eq.s32.totalorder %s29, 1
      %p208 = por %p206, %p207
      %p209 = scmp.ne.s32.totalorder %s200, %s201
      %p210 = scmp.eq.s32.totalorder %s29, 0
      %p211 = por %p209, %p210
      %p212 = scmp.ne.s32.totalorder %s200, %s201
      %p213 = scmp.eq.s32.totalorder %s30, 1
      %p214 = por %p212, %p213
      %p216 = scmp.ne.s32.totalorder %s201, %s215
      %p217 = scmp.eq.s32.totalorder %s30, 0
      %p218 = por %p216, %p217
      %s220 = sadd.s32 %s219, 1
      %p223 = scmp.eq.s32.totalorder %s24, 1
      %p224 = scmp.ne.s32.totalorder %s219, %s221
      %p225 = scmp.eq.s32.totalorder %s24, 0
      %p226 = por %p224, %p225
      %p227 = scmp.ne.s32.totalorder %s219, %s221
      %p228 = scmp.eq.s32.totalorder %s29, 1
      %p229 = por %p227, %p228
      %p230 = scmp.ne.s32.totalorder %s221, %s222
      %p231 = scmp.eq.s32.totalorder %s29, 0
      %p232 = por %p230, %p231
      %p233 = scmp.ne.s32.totalorder %s221, %s222
      %p234 = scmp.eq.s32.totalorder %s30, 1
      %p235 = por %p233, %p234
      %p237 = scmp.ne.s32.totalorder %s222, %s236
      %p238 = scmp.eq.s32.totalorder %s30, 0
      %p239 = por %p237, %p238
      %s240 = ssub.s32 %s31, %s43
      %s241 = ssub.s32 %s32, %s39
      %s242 = sor.u32 %s240, %s241
      %p243 = scmp.eq.s32.totalorder %s242, 0
      %s245 = sadd.s32 %s244, 1
      %s246 = scalar_select %p243, %s244, %s245
      %p249 = pneg %p243
      %p250 = scmp.eq.s32.totalorder %s24, 1
      %p251 = por %p249, %p250
      %p252 = scmp.ne.s32.totalorder %s244, %s247
      %p253 = scmp.eq.s32.totalorder %s24, 0
      %p254 = por %p252, %p253
      %p255 = scmp.ne.s32.totalorder %s244, %s247
      %p256 = scmp.eq.s32.totalorder %s29, 1
      %p257 = por %p255, %p256
      %p258 = scmp.ne.s32.totalorder %s247, %s248
      %p259 = scmp.eq.s32.totalorder %s29, 0
      %p260 = por %p258, %p259
      %p261 = scmp.ne.s32.totalorder %s247, %s248
      %p262 = scmp.eq.s32.totalorder %s30, 1
      %p263 = por %p261, %p262
      %p265 = scmp.ne.s32.totalorder %s248, %s264
      %p266 = scmp.eq.s32.totalorder %s30, 0
      %p267 = por %p265, %p266
      %p268 = scmp.le.s32.totalorder 1, %s24
      %p269 = scmp.lt.s32.totalorder %s24, 3
      %p270 = pnand %p268, %p269
      %p271 = pneg %p270
      // Predicated region
      $region9: #{tpu_custom_call.1} parent=5 // pred_check
        _
      $region10: #{tpu_custom_call.1} parent=5 // pred_check_branch
        %273 = sbr.rel (%p270) target = $region12
      $region11: #{tpu_custom_call.1} parent=5 // pred_region
        %s274 = ssub.s32 %s24, 1
        // Predicated region
        $region13: #{tpu_custom_call.1} parent=11 // pred_check
          %p275 = pneg %p85
        $region14: #{tpu_custom_call.1} parent=11 // pred_check_branch
          %277 = sbr.rel (%p275) target = $region16
        $region15: #{tpu_custom_call.1} parent=11 // pred_region
          %279 = vsyncadd [#allocation6], 0
          %s280 = sshll.u32 %s1, 4
          %s281 = int_to_ptr.hbm [resolvable:$true] %s280
          %s282 = sshll.u32 [#allocation5], 4
          %s283 = int_to_ptr.vmem [resolvable:$true] %s282
          %288 = dma.hbm_to_vmem [thread:$0]  %s281, 2048, %s283, [#allocation6], 128, 128, 8
        $region16: #{tpu_custom_call.1} parent=11 // pred_fallthru
          _
        // Predicated region
        $region17: #{tpu_custom_call.1} parent=11 // pred_check
          %p289 = pneg %p106
        $region18: #{tpu_custom_call.1} parent=11 // pred_check_branch
          %291 = sbr.rel (%p289) target = $region20
        $region19: #{tpu_custom_call.1} parent=11 // pred_region
          %293 = vsyncadd [#allocation6], 0
          %s295 = sshll.u32 %s2, 4
          %s296 = int_to_ptr.hbm [resolvable:$true] %s295
          %s297 = sshll.u32 [#allocation7], 4
          %s298 = int_to_ptr.vmem [resolvable:$true] %s297
          %300 = dma.hbm_to_vmem [thread:$0]  %s296, 16, %s298, [#allocation6]
        $region20: #{tpu_custom_call.1} parent=11 // pred_fallthru
          _
        // Predicated region
        $region21: #{tpu_custom_call.1} parent=11 // pred_check
          %p301 = pneg %p127
        $region22: #{tpu_custom_call.1} parent=11 // pred_check_branch
          %303 = sbr.rel (%p301) target = $region24
        $region23: #{tpu_custom_call.1} parent=11 // pred_region
          %305 = vsyncadd [#allocation9], 0
          %s306 = sshll.u32 %s3, 4
          %s307 = int_to_ptr.hbm [resolvable:$true] %s306
          %s308 = sshll.u32 [#allocation8], 4
          %s309 = int_to_ptr.vmem [resolvable:$true] %s308
          %314 = dma.hbm_to_vmem [thread:$0]  %s307, 4096, %s309, [#allocation9], 128, 128, 8
        $region24: #{tpu_custom_call.1} parent=11 // pred_fallthru
          _
        // Predicated region
        $region25: #{tpu_custom_call.1} parent=11 // pred_check
          %p315 = pneg %p148
        $region26: #{tpu_custom_call.1} parent=11 // pred_check_branch
          %317 = sbr.rel (%p315) target = $region28
        $region27: #{tpu_custom_call.1} parent=11 // pred_region
          _
        $region28: #{tpu_custom_call.1} parent=11 // pred_fallthru
          _
        // Predicated region
        $region29: #{tpu_custom_call.1} parent=11 // pred_check
          %p318 = pneg %p169
        $region30: #{tpu_custom_call.1} parent=11 // pred_check_branch
          %320 = sbr.rel (%p318) target = $region32
        $region31: #{tpu_custom_call.1} parent=11 // pred_region
          %322 = vsyncadd [#allocation9], 0
          %s323 = sshll.u32 %s5, 4
          %s324 = int_to_ptr.hbm [resolvable:$true] %s323
          %s325 = sshll.u32 [#allocation10], 4
          %s326 = int_to_ptr.vmem [resolvable:$true] %s325
          %331 = dma.hbm_to_vmem [thread:$0]  %s324, 4096, %s326, [#allocation9], 128, 128, 8
        $region32: #{tpu_custom_call.1} parent=11 // pred_fallthru
          _
        // Predicated region
        $region33: #{tpu_custom_call.1} parent=11 // pred_check
          %p332 = pneg %p190
        $region34: #{tpu_custom_call.1} parent=11 // pred_check_branch
          %334 = sbr.rel (%p332) target = $region36
        $region35: #{tpu_custom_call.1} parent=11 // pred_region
          _
        $region36: #{tpu_custom_call.1} parent=11 // pred_fallthru
          _
        // Predicated region
        $region37: #{tpu_custom_call.1} parent=11 // pred_check
          %p335 = pneg %p211
        $region38: #{tpu_custom_call.1} parent=11 // pred_check_branch
          %337 = sbr.rel (%p335) target = $region40
        $region39: #{tpu_custom_call.1} parent=11 // pred_region
          %339 = vsyncadd [#allocation12], 0
          %s340 = sshll.u32 %s7, 4
          %s341 = int_to_ptr.hbm [resolvable:$true] %s340
          %s342 = sshll.u32 [#allocation11], 4
          %s343 = int_to_ptr.vmem [resolvable:$true] %s342
          %348 = dma.hbm_to_vmem [thread:$0]  %s341, 2048, %s343, [#allocation12], 128, 128, 8
        $region40: #{tpu_custom_call.1} parent=11 // pred_fallthru
          _
        // Predicated region
        $region41: #{tpu_custom_call.1} parent=11 // pred_check
          %p349 = pneg %p232
        $region42: #{tpu_custom_call.1} parent=11 // pred_check_branch
          %351 = sbr.rel (%p349) target = $region44
        $region43: #{tpu_custom_call.1} parent=11 // pred_region
          _
        $region44: #{tpu_custom_call.1} parent=11 // pred_fallthru
          _
      $region12: #{tpu_custom_call.1} parent=5 // pred_fallthru
        _
      %p352 = scmp.lt.s32.totalorder %s24, 2
      // Predicated region
      $region45: #{tpu_custom_call.1} parent=5 // pred_check
        %p353 = pneg %p352
      $region46: #{tpu_custom_call.1} parent=5 // pred_check_branch
        %355 = sbr.rel (%p353) target = $region48
      $region47: #{tpu_custom_call.1} parent=5 // pred_region
        // Predicated region
        $region49: #{tpu_custom_call.1} parent=47 // pred_check
          %p356 = pneg %p58
        $region50: #{tpu_custom_call.1} parent=47 // pred_check_branch
          %358 = sbr.rel (%p356) target = $region52
        $region51: #{tpu_custom_call.1} parent=47 // pred_region
          %s359 = sand.u32 %s48, 1
          %s360 = scalar_lea.sflag [#allocation3], %s359
          %s361 = sand.u32 %s48, 1
          %s362 = smul.addr %s361, 16
          %s363 = scalar_lea.vmem [#allocation2], %s362
          %s364 = smul.u32 2, %s32
          %366 = vsyncadd %s360, 0
          %s367 = smul.addr %s31, 2
          %s368 = sadd.s32 %s364, %s367
          %s369 = smul.addr %s368, 8
          %s370 = scalar_lea.hbm %s0, %s369
          %s371 = sshll.u32 %s370, 4
          %s372 = int_to_ptr.hbm [resolvable:$true] %s371
          %s373 = sshll.u32 %s363, 4
          %s374 = int_to_ptr.vmem [resolvable:$true] %s373
          %379 = dma.hbm_to_vmem [thread:$0]  %s372, 256, %s374, %s360, 128, 128, 8
        $region52: #{tpu_custom_call.1} parent=47 // pred_fallthru
          _
      $region48: #{tpu_custom_call.1} parent=5 // pred_fallthru
        _
      %p380 = scmp.le.s32.totalorder 1, %s24
      %p381 = scmp.lt.s32.totalorder %s24, 3
      %p382 = pnand %p380, %p381
      %p383 = pneg %p382
      // Predicated region
      $region53: #{tpu_custom_call.1} parent=5 // pred_check
        _
      $region54: #{tpu_custom_call.1} parent=5 // pred_check_branch
        %385 = sbr.rel (%p382) target = $region56
      $region55: #{tpu_custom_call.1} parent=5 // pred_region
        %s386 = ssub.s32 %s24, 1
        %s387 = sand.u32 %s51, 1
        %s388 = scalar_lea.sflag [#allocation3], %s387
        %s389 = sand.u32 %s51, 1
        %s390 = smul.addr %s389, 16
        %s391 = scalar_lea.vmem [#allocation2], %s390
        // Predicated region
        $region57: #{tpu_custom_call.1} parent=55 // pred_check
          %p392 = pneg %p64
        $region58: #{tpu_custom_call.1} parent=55 // pred_check_branch
          %394 = sbr.rel (%p392) target = $region60
        $region59: #{tpu_custom_call.1} parent=55 // pred_region
          %396 = dma.done %s388, 256
        $region60: #{tpu_custom_call.1} parent=55 // pred_fallthru
          _
        // Predicated region
        $region61: #{tpu_custom_call.1} parent=55 // pred_check
          %p397 = pneg %p85
        $region62: #{tpu_custom_call.1} parent=55 // pred_check_branch
          %399 = sbr.rel (%p397) target = $region64
        $region63: #{tpu_custom_call.1} parent=55 // pred_region
          %401 = dma.done [#allocation6], 2048
        $region64: #{tpu_custom_call.1} parent=55 // pred_fallthru
          _
        // Predicated region
        $region65: #{tpu_custom_call.1} parent=55 // pred_check
          %p402 = pneg %p106
        $region66: #{tpu_custom_call.1} parent=55 // pred_check_branch
          %404 = sbr.rel (%p402) target = $region68
        $region67: #{tpu_custom_call.1} parent=55 // pred_region
          %406 = dma.done [#allocation6], 16
        $region68: #{tpu_custom_call.1} parent=55 // pred_fallthru
          _
        // Predicated region
        $region69: #{tpu_custom_call.1} parent=55 // pred_check
          %p407 = pneg %p127
        $region70: #{tpu_custom_call.1} parent=55 // pred_check_branch
          %409 = sbr.rel (%p407) target = $region72
        $region71: #{tpu_custom_call.1} parent=55 // pred_region
          %411 = dma.done [#allocation9], 4096
        $region72: #{tpu_custom_call.1} parent=55 // pred_fallthru
          _
        // Predicated region
        $region73: #{tpu_custom_call.1} parent=55 // pred_check
          %p412 = pneg %p169
        $region74: #{tpu_custom_call.1} parent=55 // pred_check_branch
          %414 = sbr.rel (%p412) target = $region76
        $region75: #{tpu_custom_call.1} parent=55 // pred_region
          %416 = dma.done [#allocation9], 4096
        $region76: #{tpu_custom_call.1} parent=55 // pred_fallthru
          _
        // Predicated region
        $region77: #{tpu_custom_call.1} parent=55 // pred_check
          %p417 = pneg %p211
        $region78: #{tpu_custom_call.1} parent=55 // pred_check_branch
          %419 = sbr.rel (%p417) target = $region80
        $region79: #{tpu_custom_call.1} parent=55 // pred_region
          %421 = dma.done [#allocation12], 2048
        $region80: #{tpu_custom_call.1} parent=55 // pred_fallthru
          _
        %s422 = sand.u32 %s51, 1
        %s423 = scalar_lea.sflag [#allocation3], %s422
        %s424 = sand.u32 %s51, 1
        %s425 = smul.addr %s424, 16
        %s426 = scalar_lea.vmem [#allocation2], %s425
        %p427 = pneg %p64
        %p428 = pneg %p61
        %p429 = pneg %p85
        %p430 = pneg %p82
        %p431 = pneg %p106
        %p432 = pneg %p103
        %p433 = pneg %p127
        %p434 = pneg %p124
        %p435 = pneg %p148
        %p436 = pneg %p145
        %p437 = pneg %p169
        %p438 = pneg %p166
        %p439 = pneg %p190
        %p440 = pneg %p187
        %p441 = pneg %p211
        %p442 = pneg %p208
        %p443 = pneg %p232
        %p444 = pneg %p229
        %p445 = pneg %p260
        %p446 = pneg %p257
        %s447 = sand.u32 %s247, 1
        %s448 = scalar_lea.sflag [#allocation4], %s447
        %s449 = sand.u32 %s247, 1
        %s450 = smul.addr %s449, 16
        %s451 = scalar_lea.vmem [#allocation13], %s450
        %s452 = smul.u32 2, %s34
        %s453 = smul.u32 2, %s34
        %v454 = vld [vmem:[%s391] sm:$0xff]
        %v455 = vld [vmem:[%s391 + $0x8] sm:$0xff]
        %v456 = vld [vmem:[#allocation5] sm:$0xff]
        %v457 = vld [vmem:[#allocation5 + $0x8] sm:$0xff]
        %v458 = vld [vmem:[#allocation5 + $0x10] sm:$0xff]
        %v459 = vld [vmem:[#allocation5 + $0x18] sm:$0xff]
        %v460 = vld [vmem:[#allocation5 + $0x20] sm:$0xff]
        %v461 = vld [vmem:[#allocation5 + $0x28] sm:$0xff]
        %v462 = vld [vmem:[#allocation5 + $0x30] sm:$0xff]
        %v463 = vld [vmem:[#allocation5 + $0x38] sm:$0xff]
        %v464 = vld [vmem:[#allocation5 + $0x40] sm:$0xff]
        %v465 = vld [vmem:[#allocation5 + $0x48] sm:$0xff]
        %v466 = vld [vmem:[#allocation5 + $0x50] sm:$0xff]
        %v467 = vld [vmem:[#allocation5 + $0x58] sm:$0xff]
        %v468 = vld [vmem:[#allocation5 + $0x60] sm:$0xff]
        %v469 = vld [vmem:[#allocation5 + $0x68] sm:$0xff]
        %v470 = vld [vmem:[#allocation5 + $0x70] sm:$0xff]
        %v471 = vld [vmem:[#allocation5 + $0x78] sm:$0xff]
        %v472 = vld [vmem:[#allocation7] sm:$0x1]
        %v474 = vperm.slane %v472, 0
        %476 = vmatpush.msra.mxu0 %v471
        %477 = vmatpush.msra.mxu0 %v470
        %478 = vmatpush.msra.mxu0 %v469
        %479 = vmatpush.msra.mxu0 %v468
        %480 = vmatpush.msra.mxu0 %v467
        %481 = vmatpush.msra.mxu0 %v466
        %482 = vmatpush.msra.mxu0 %v465
        %483 = vmatpush.msra.mxu0 %v464
        %484 = vmatpush.msra.mxu0 %v463
        %485 = vmatpush.msra.mxu0 %v462
        %486 = vmatpush.msra.mxu0 %v461
        %487 = vmatpush.msra.mxu0 %v460
        %488 = vmatpush.msra.mxu0 %v459
        %489 = vmatpush.msra.mxu0 %v458
        %490 = vmatpush.msra.mxu0 %v457
        %491 = vmatpush.msra.mxu0 %v456
        %492 = vmatmul.f32.gmra.mxu0 %v454
        %v493 = vpop.f32.mrf.mxu0
        %v494 = vadd.f32 %v474, %v493
        %495 = vmatmul.f32.gmra.mxu0 %v455
        %v496 = vpop.f32.mrf.mxu0
        %v497 = vadd.f32 %v474, %v496
        %498 = vdwg.mxu0
        %v499 = vmax.f32 %v494, 0.0
        %v500 = vmax.f32 %v497, 0.0
        %v501 = vld [vmem:[#allocation8] sm:$0xff]
        %v502 = vld [vmem:[#allocation8 + $0x8] sm:$0xff]
        %v503 = vld [vmem:[#allocation8 + $0x10] sm:$0xff]
        %v504 = vld [vmem:[#allocation8 + $0x18] sm:$0xff]
        %v505 = vld [vmem:[#allocation8 + $0x20] sm:$0xff]
        %v506 = vld [vmem:[#allocation8 + $0x28] sm:$0xff]
        %v507 = vld [vmem:[#allocation8 + $0x30] sm:$0xff]
        %v508 = vld [vmem:[#allocation8 + $0x38] sm:$0xff]
        %v509 = vld [vmem:[#allocation8 + $0x40] sm:$0xff]
        %v510 = vld [vmem:[#allocation8 + $0x48] sm:$0xff]
        %v511 = vld [vmem:[#allocation8 + $0x50] sm:$0xff]
        %v512 = vld [vmem:[#allocation8 + $0x58] sm:$0xff]
        %v513 = vld [vmem:[#allocation8 + $0x60] sm:$0xff]
        %v514 = vld [vmem:[#allocation8 + $0x68] sm:$0xff]
        %v515 = vld [vmem:[#allocation8 + $0x70] sm:$0xff]
        %v516 = vld [vmem:[#allocation8 + $0x78] sm:$0xff]
        %v517 = vld [vmem:[%s4] sm:$0x1]
        %v519 = vperm.slane %v517, 0
        %521 = vmatpush.msra.mxu0 %v516
        %522 = vmatpush.msra.mxu0 %v515
        %523 = vmatpush.msra.mxu0 %v514
        %524 = vmatpush.msra.mxu0 %v513
        %525 = vmatpush.msra.mxu0 %v512
        %526 = vmatpush.msra.mxu0 %v511
        %527 = vmatpush.msra.mxu0 %v510
        %528 = vmatpush.msra.mxu0 %v509
        %529 = vmatpush.msra.mxu0 %v508
        %530 = vmatpush.msra.mxu0 %v507
        %531 = vmatpush.msra.mxu0 %v506
        %532 = vmatpush.msra.mxu0 %v505
        %533 = vmatpush.msra.mxu0 %v504
        %534 = vmatpush.msra.mxu0 %v503
        %535 = vmatpush.msra.mxu0 %v502
        %536 = vmatpush.msra.mxu0 %v501
        %537 = vmatmul.f32.gmra.mxu0 %v499
        %v538 = vpop.f32.mrf.mxu0
        %v539 = vadd.f32 %v519, %v538
        %540 = vmatmul.f32.gmra.mxu0 %v500
        %v541 = vpop.f32.mrf.mxu0
        %v542 = vadd.f32 %v519, %v541
        %543 = vdwg.mxu0
        %v544 = vmax.f32 %v539, 0.0
        %v545 = vmax.f32 %v542, 0.0
        %v546 = vld [vmem:[#allocation10] sm:$0xff]
        %v547 = vld [vmem:[#allocation10 + $0x8] sm:$0xff]
        %v548 = vld [vmem:[#allocation10 + $0x10] sm:$0xff]
        %v549 = vld [vmem:[#allocation10 + $0x18] sm:$0xff]
        %v550 = vld [vmem:[#allocation10 + $0x20] sm:$0xff]
        %v551 = vld [vmem:[#allocation10 + $0x28] sm:$0xff]
        %v552 = vld [vmem:[#allocation10 + $0x30] sm:$0xff]
        %v553 = vld [vmem:[#allocation10 + $0x38] sm:$0xff]
        %v554 = vld [vmem:[#allocation10 + $0x40] sm:$0xff]
        %v555 = vld [vmem:[#allocation10 + $0x48] sm:$0xff]
        %v556 = vld [vmem:[#allocation10 + $0x50] sm:$0xff]
        %v557 = vld [vmem:[#allocation10 + $0x58] sm:$0xff]
        %v558 = vld [vmem:[#allocation10 + $0x60] sm:$0xff]
        %v559 = vld [vmem:[#allocation10 + $0x68] sm:$0xff]
        %v560 = vld [vmem:[#allocation10 + $0x70] sm:$0xff]
        %v561 = vld [vmem:[#allocation10 + $0x78] sm:$0xff]
        %v562 = vld [vmem:[%s6] sm:$0x1]
        %v564 = vperm.slane %v562, 0
        %566 = vmatpush.msra.mxu0 %v561
        %567 = vmatpush.msra.mxu0 %v560
        %568 = vmatpush.msra.mxu0 %v559
        %569 = vmatpush.msra.mxu0 %v558
        %570 = vmatpush.msra.mxu0 %v557
        %571 = vmatpush.msra.mxu0 %v556
        %572 = vmatpush.msra.mxu0 %v555
        %573 = vmatpush.msra.mxu0 %v554
        %574 = vmatpush.msra.mxu0 %v553
        %575 = vmatpush.msra.mxu0 %v552
        %576 = vmatpush.msra.mxu0 %v551
        %577 = vmatpush.msra.mxu0 %v550
        %578 = vmatpush.msra.mxu0 %v549
        %579 = vmatpush.msra.mxu0 %v548
        %580 = vmatpush.msra.mxu0 %v547
        %581 = vmatpush.msra.mxu0 %v546
        %582 = vmatmul.f32.gmra.mxu0 %v544
        %v583 = vpop.f32.mrf.mxu0
        %v584 = vadd.f32 %v564, %v583
        %585 = vmatmul.f32.gmra.mxu0 %v545
        %v586 = vpop.f32.mrf.mxu0
        %v587 = vadd.f32 %v564, %v586
        %588 = vdwg.mxu0
        %v589 = vadd.f32 %v584, %v499
        %v590 = vadd.f32 %v587, %v500
        %s591 = scalar_lea.vmem [#allocation8], 128
        %v592 = vld [vmem:[%s591] sm:$0xff]
        %v593 = vld [vmem:[%s591 + $0x8] sm:$0xff]
        %v594 = vld [vmem:[%s591 + $0x10] sm:$0xff]
        %v595 = vld [vmem:[%s591 + $0x18] sm:$0xff]
        %v596 = vld [vmem:[%s591 + $0x20] sm:$0xff]
        %v597 = vld [vmem:[%s591 + $0x28] sm:$0xff]
        %v598 = vld [vmem:[%s591 + $0x30] sm:$0xff]
        %v599 = vld [vmem:[%s591 + $0x38] sm:$0xff]
        %v600 = vld [vmem:[%s591 + $0x40] sm:$0xff]
        %v601 = vld [vmem:[%s591 + $0x48] sm:$0xff]
        %v602 = vld [vmem:[%s591 + $0x50] sm:$0xff]
        %v603 = vld [vmem:[%s591 + $0x58] sm:$0xff]
        %v604 = vld [vmem:[%s591 + $0x60] sm:$0xff]
        %v605 = vld [vmem:[%s591 + $0x68] sm:$0xff]
        %v606 = vld [vmem:[%s591 + $0x70] sm:$0xff]
        %v607 = vld [vmem:[%s591 + $0x78] sm:$0xff]
        %s608 = scalar_lea.vmem %s4, 1
        %v609 = vld [vmem:[%s608] sm:$0x1]
        %v611 = vperm.slane %v609, 0
        %613 = vmatpush.msra.mxu0 %v607
        %614 = vmatpush.msra.mxu0 %v606
        %615 = vmatpush.msra.mxu0 %v605
        %616 = vmatpush.msra.mxu0 %v604
        %617 = vmatpush.msra.mxu0 %v603
        %618 = vmatpush.msra.mxu0 %v602
        %619 = vmatpush.msra.mxu0 %v601
        %620 = vmatpush.msra.mxu0 %v600
        %621 = vmatpush.msra.mxu0 %v599
        %622 = vmatpush.msra.mxu0 %v598
        %623 = vmatpush.msra.mxu0 %v597
        %624 = vmatpush.msra.mxu0 %v596
        %625 = vmatpush.msra.mxu0 %v595
        %626 = vmatpush.msra.mxu0 %v594
        %627 = vmatpush.msra.mxu0 %v593
        %628 = vmatpush.msra.mxu0 %v592
        %629 = vmatmul.f32.gmra.mxu0 %v589
        %v630 = vpop.f32.mrf.mxu0
        %v631 = vadd.f32 %v611, %v630
        %632 = vmatmul.f32.gmra.mxu0 %v590
        %v633 = vpop.f32.mrf.mxu0
        %v634 = vadd.f32 %v611, %v633
        %635 = vdwg.mxu0
        %v636 = vmax.f32 %v631, 0.0
        %v637 = vmax.f32 %v634, 0.0
        %s638 = scalar_lea.vmem [#allocation10], 128
        %v639 = vld [vmem:[%s638] sm:$0xff]
        %v640 = vld [vmem:[%s638 + $0x8] sm:$0xff]
        %v641 = vld [vmem:[%s638 + $0x10] sm:$0xff]
        %v642 = vld [vmem:[%s638 + $0x18] sm:$0xff]
        %v643 = vld [vmem:[%s638 + $0x20] sm:$0xff]
        %v644 = vld [vmem:[%s638 + $0x28] sm:$0xff]
        %v645 = vld [vmem:[%s638 + $0x30] sm:$0xff]
        %v646 = vld [vmem:[%s638 + $0x38] sm:$0xff]
        %v647 = vld [vmem:[%s638 + $0x40] sm:$0xff]
        %v648 = vld [vmem:[%s638 + $0x48] sm:$0xff]
        %v649 = vld [vmem:[%s638 + $0x50] sm:$0xff]
        %v650 = vld [vmem:[%s638 + $0x58] sm:$0xff]
        %v651 = vld [vmem:[%s638 + $0x60] sm:$0xff]
        %v652 = vld [vmem:[%s638 + $0x68] sm:$0xff]
        %v653 = vld [vmem:[%s638 + $0x70] sm:$0xff]
        %v654 = vld [vmem:[%s638 + $0x78] sm:$0xff]
        %s655 = scalar_lea.vmem %s6, 1
        %v656 = vld [vmem:[%s655] sm:$0x1]
        %v658 = vperm.slane %v656, 0
        %660 = vmatpush.msra.mxu0 %v654
        %661 = vmatpush.msra.mxu0 %v653
        %662 = vmatpush.msra.mxu0 %v652
        %663 = vmatpush.msra.mxu0 %v651
        %664 = vmatpush.msra.mxu0 %v650
        %665 = vmatpush.msra.mxu0 %v649
        %666 = vmatpush.msra.mxu0 %v648
        %667 = vmatpush.msra.mxu0 %v647
        %668 = vmatpush.msra.mxu0 %v646
        %669 = vmatpush.msra.mxu0 %v645
        %670 = vmatpush.msra.mxu0 %v644
        %671 = vmatpush.msra.mxu0 %v643
        %672 = vmatpush.msra.mxu0 %v642
        %673 = vmatpush.msra.mxu0 %v641
        %674 = vmatpush.msra.mxu0 %v640
        %675 = vmatpush.msra.mxu0 %v639
        %676 = vmatmul.f32.gmra.mxu0 %v636
        %v677 = vpop.f32.mrf.mxu0
        %v678 = vadd.f32 %v658, %v677
        %679 = vmatmul.f32.gmra.mxu0 %v637
        %v680 = vpop.f32.mrf.mxu0
        %v681 = vadd.f32 %v658, %v680
        %682 = vdwg.mxu0
        %v683 = vadd.f32 %v678, %v589
        %v684 = vadd.f32 %v681, %v590
        %v685 = vld [vmem:[#allocation11] sm:$0xff]
        %v686 = vld [vmem:[#allocation11 + $0x8] sm:$0xff]
        %v687 = vld [vmem:[#allocation11 + $0x10] sm:$0xff]
        %v688 = vld [vmem:[#allocation11 + $0x18] sm:$0xff]
        %v689 = vld [vmem:[#allocation11 + $0x20] sm:$0xff]
        %v690 = vld [vmem:[#allocation11 + $0x28] sm:$0xff]
        %v691 = vld [vmem:[#allocation11 + $0x30] sm:$0xff]
        %v692 = vld [vmem:[#allocation11 + $0x38] sm:$0xff]
        %v693 = vld [vmem:[#allocation11 + $0x40] sm:$0xff]
        %v694 = vld [vmem:[#allocation11 + $0x48] sm:$0xff]
        %v695 = vld [vmem:[#allocation11 + $0x50] sm:$0xff]
        %v696 = vld [vmem:[#allocation11 + $0x58] sm:$0xff]
        %v697 = vld [vmem:[#allocation11 + $0x60] sm:$0xff]
        %v698 = vld [vmem:[#allocation11 + $0x68] sm:$0xff]
        %v699 = vld [vmem:[#allocation11 + $0x70] sm:$0xff]
        %v700 = vld [vmem:[#allocation11 + $0x78] sm:$0xff]
        %v701 = vld [vmem:[%s8] sm:$0x1]
        %v703 = vperm.slane %v701, 0
        %705 = vmatpush.msra.mxu0 %v700
        %706 = vmatpush.msra.mxu0 %v699
        %707 = vmatpush.msra.mxu0 %v698
        %708 = vmatpush.msra.mxu0 %v697
        %709 = vmatpush.msra.mxu0 %v696
        %710 = vmatpush.msra.mxu0 %v695
        %711 = vmatpush.msra.mxu0 %v694
        %712 = vmatpush.msra.mxu0 %v693
        %713 = vmatpush.msra.mxu0 %v692
        %714 = vmatpush.msra.mxu0 %v691
        %715 = vmatpush.msra.mxu0 %v690
        %716 = vmatpush.msra.mxu0 %v689
        %717 = vmatpush.msra.mxu0 %v688
        %718 = vmatpush.msra.mxu0 %v687
        %719 = vmatpush.msra.mxu0 %v686
        %720 = vmatpush.msra.mxu0 %v685
        %721 = vmatmul.f32.gmra.mxu0 %v683
        %v722 = vpop.f32.mrf.mxu0
        %v723 = vadd.f32 %v703, %v722
        %724 = vmatmul.f32.gmra.mxu0 %v684
        %v725 = vpop.f32.mrf.mxu0
        %v726 = vadd.f32 %v703, %v725
        %727 = vdwg.mxu0
        %728 = vst [vmem:[%s451] sm:$0xff] %v723
        %729 = vst [vmem:[%s451 + $0x8] sm:$0xff] %v726
        %s730 = sand.u32 %s247, 1
        %s731 = scalar_lea.sflag [#allocation4], %s730
        %s732 = sand.u32 %s247, 1
        %s733 = smul.addr %s732, 16
        %s734 = scalar_lea.vmem [#allocation13], %s733
        // Predicated region
        $region81: #{tpu_custom_call.1} parent=55 // pred_check
          %p735 = pneg %p257
        $region82: #{tpu_custom_call.1} parent=55 // pred_check_branch
          %737 = sbr.rel (%p735) target = $region84
        $region83: #{tpu_custom_call.1} parent=55 // pred_region
          %s738 = smul.u32 2, %s34
          %740 = vsyncadd %s731, 0
          %s741 = smul.addr %s33, 2
          %s742 = sadd.s32 %s738, %s741
          %s743 = smul.addr %s742, 8
          %s744 = scalar_lea.hbm %s9, %s743
          %s745 = sshll.u32 %s734, 4
          %s746 = int_to_ptr.vmem [resolvable:$true] %s745
          %s747 = sshll.u32 %s744, 4
          %s748 = int_to_ptr.hbm [resolvable:$true] %s747
          %753 = dma.vmem_to_hbm [thread:$0]  %s746, 256, %s748, %s731, 128, 128, 8
        $region84: #{tpu_custom_call.1} parent=55 // pred_fallthru
          _
      $region56: #{tpu_custom_call.1} parent=5 // pred_fallthru
        _
      %p754 = scmp.le.s32.totalorder 2, %s24
      // Predicated region
      $region85: #{tpu_custom_call.1} parent=5 // pred_check
        %p755 = pneg %p754
      $region86: #{tpu_custom_call.1} parent=5 // pred_check_branch
        %757 = sbr.rel (%p755) target = $region88
      $region87: #{tpu_custom_call.1} parent=5 // pred_region
        %s758 = ssub.s32 %s24, 2
        // Predicated region
        $region89: #{tpu_custom_call.1} parent=87 // pred_check
          %p759 = pneg %p263
        $region90: #{tpu_custom_call.1} parent=87 // pred_check_branch
          %761 = sbr.rel (%p759) target = $region92
        $region91: #{tpu_custom_call.1} parent=87 // pred_region
          %s762 = sand.u32 %s248, 1
          %s763 = scalar_lea.sflag [#allocation4], %s762
          %s764 = sand.u32 %s248, 1
          %s765 = smul.addr %s764, 16
          %s766 = scalar_lea.vmem [#allocation13], %s765
          %768 = dma.done %s763, 256
        $region92: #{tpu_custom_call.1} parent=87 // pred_fallthru
          _
      $region88: #{tpu_custom_call.1} parent=5 // pred_fallthru
        _
    $region6: #{tpu_custom_call.1} parent=1 // loop_footer
      %s28 = sadd.s32 1, %s24
    $region7: #{tpu_custom_call.1} parent=1 // loop_footer_branch
      %23 = sbr.rel target = $region3
    $region8: #{tpu_custom_call.1} parent=1 // loop_exit
      _
    %769 = vsyncpa [#allocation3], 1
    %s770 = scalar_lea.sflag [#allocation3], 1
    %771 = vsyncpa %s770, 1
    %772 = vsyncpa [#allocation6], 1
    %773 = vsyncpa [#allocation9], 1
    %774 = vsyncpa [#allocation12], 1
    %775 = vsyncpa [#allocation4], 1
    %s776 = scalar_lea.sflag [#allocation4], 1
    %777 = vsyncpa %s776, 1

</llo_original>
